<compile_context>
chip_gen: v7x
topology: tpu7x:2x2x1
jax: 0.10.0
libtpu: 0.0.40
codegen_flags: <defaults>
</compile_context>

<pallas_src>
import jax
import jax.numpy as jnp
from jax.experimental import pallas as pl
from jax.experimental.pallas import tpu as pltpu


def _dst_up_kernel(x_ref, y_ref,            # VMEM (bn, Cin, thw)
                   wm_ref, wa_ref,          # scale-folded W^T: (Cout, Cin) each
                   shift_ref,               # packed shifts: (Cout, 2) [main | aac]
                   out_ref, yout_ref):      # VMEM (bn, Cout, thw) — lane-dense
    shifts = shift_ref[...]
    bm = shifts[:, 0:1]                     # (Cout, 1) main shift (BN + sigmoid(w) folded)
    ba = shifts[:, 1:2]                     # (Cout, 1) aac  shift (BN folded)
    wm = wm_ref[...]
    wa = wa_ref[...]

    bn = x_ref.shape[0]
    for b in range(bn):                     # small static unroll over the batch sub-tile
        # main: conv1x1 (scale-folded) -> +shift -> heaviside spike
        v = jnp.dot(wm, x_ref[b], preferred_element_type=jnp.float32) + bm
        spike = (v >= 1.0).astype(jnp.float32)
        out_ref[b] = spike.astype(out_ref.dtype)

        # aac: conv1x1 (scale-folded) -> +shift -> ReLU, then residual add of spike
        pre_a = jnp.dot(wa, y_ref[b], preferred_element_type=jnp.float32) + ba
        yout_ref[b] = (jnp.maximum(pre_a, 0.0) + spike).astype(yout_ref.dtype)


def _choose_tiles(N, Cin, Cout, HW, vmem_cap_bytes):
    """Pick (bn, thw): batch sub-tile and lane-dense spatial tile from a VMEM budget."""
    # Per spatial column the double-buffered pipeline carries 2 input + 2 output
    # streams of f32 -> 2 buffers * 2*(Cin + Cout) * 4 bytes.
    bytes_per_col = 2 * 2 * (Cin + Cout) * 4
    budget = max(vmem_cap_bytes // 3, 4 << 20)       # leave room for weights/scratch
    max_cols = max(budget // bytes_per_col, 128)

    # Spatial tile: full HW when it fits (always a legal block), else a 128-multiple.
    if HW <= max_cols:
        thw = HW
    else:
        thw = max((max_cols // 128) * 128, 128)

    # Batch sub-tile: only when the whole HW fits in one tile; keep bn a divisor of N.
    bn = 1
    if thw == HW:
        cap = max(1, min(N, max_cols // max(thw, 1)))
        for cand in range(cap, 0, -1):
            if N % cand == 0:
                bn = cand
                break

    # Guarantee >=2 grid blocks so v7x's 2nd TensorCore has work (no effect on v5e/v6e).
    n_blocks = N // bn
    hw_blocks = pl.cdiv(HW, thw)
    if n_blocks * hw_blocks < 2:
        if N > 1:
            for cand in range(max(1, N // 2), 0, -1):
                if N % cand == 0:
                    bn = cand
                    break
        elif HW >= 256:
            thw = ((HW // 2 + 127) // 128) * 128      # split HW into 2 lane-aligned tiles
    return bn, thw


def dst_up_channel_block(x, y, params, *, out_dtype=jnp.float32):
    """x, y: NCHW float32. Returns (out, y_out), both NCHW with out_channels."""
    N, Cin, H, W = x.shape
    Cout = params["w_main"].shape[1]
    HW = H * W

    # Channels-first views — zero data movement (no NCHW<->NHWC transposes).
    xm = x.reshape(N, Cin, HW)
    ym = y.reshape(N, Cin, HW)

    # --- Fold everything per-channel into the weights + a single shift per branch ---
    eps = 1e-5
    f32 = lambda a: jnp.asarray(a, jnp.float32)

    sig_w = jax.nn.sigmoid(f32(params["plif_w"]))                 # PLIF decay factor
    std_m = jnp.sqrt(f32(params["bn_main_var"]) + eps)
    scale_m = f32(params["bn_main_gamma"]) / std_m * sig_w
    shift_m = (f32(params["bn_main_beta"])
               - f32(params["bn_main_mean"]) * f32(params["bn_main_gamma"]) / std_m) * sig_w

    std_a = jnp.sqrt(f32(params["bn_aac_var"]) + eps)
    scale_a = f32(params["bn_aac_gamma"]) / std_a
    shift_a = f32(params["bn_aac_beta"]) - f32(params["bn_aac_mean"]) * scale_a

    # Scale-folded, transposed 1x1 weights: (Cout, Cin) so tile matmuls are lane-dense.
    wmT = f32(params["w_main"]).T * scale_m[:, None]
    waT = f32(params["w_aac"]).T * scale_a[:, None]
    shifts = jnp.stack([shift_m, shift_a], axis=1)                # (Cout, 2)

    # --- Generation-aware tile sizing / VMEM limit ---
    try:
        vmem_cap = int(pltpu.get_tpu_info().vmem_capacity_bytes)
    except Exception:
        vmem_cap = 64 << 20                                       # conservative (v7x-sized)
    vmem_limit = int(min(max(vmem_cap * 3 // 4, 32 << 20), 100 << 20))

    bn, thw = _choose_tiles(N, Cin, Cout, HW, vmem_cap)
    grid = (N // bn, pl.cdiv(HW, thw))

    const = lambda shape: pl.BlockSpec(shape, lambda n, j: (0, 0))  # resident operands

    out_m, yout_m = pl.pallas_call(
        _dst_up_kernel,
        out_shape=(jax.ShapeDtypeStruct((N, Cout, HW), out_dtype),
                   jax.ShapeDtypeStruct((N, Cout, HW), out_dtype)),
        grid=grid,
        in_specs=[
            pl.BlockSpec((bn, Cin, thw), lambda n, j: (n, 0, j)),   # x tile  (bn, Cin, thw)
            pl.BlockSpec((bn, Cin, thw), lambda n, j: (n, 0, j)),   # y tile  (bn, Cin, thw)
            const((Cout, Cin)),                                     # W_main^T * scale_main
            const((Cout, Cin)),                                     # W_aac^T  * scale_aac
            const((Cout, 2)),                                       # packed shifts
        ],
        out_specs=(pl.BlockSpec((bn, Cout, thw), lambda n, j: (n, 0, j)),
                   pl.BlockSpec((bn, Cout, thw), lambda n, j: (n, 0, j))),
        compiler_params=pltpu.CompilerParams(
            dimension_semantics=("parallel", "parallel"),
            vmem_limit_bytes=vmem_limit),
    )(xm, ym, wmT, waT, shifts)

    # (N, Cout, H*W) -> NCHW: pure reshape, zero data movement.
    return out_m.reshape(N, Cout, H, W), yout_m.reshape(N, Cout, H, W)


def _reference(x, y, params):
    """Pure-JAX reference (same math, NCHW, PyTorch-faithful op ordering)."""
    Cout = params["w_main"].shape[1]
    eps = 1e-5

    def conv1x1(z, w):  # z: NCHW, w: (Cin, Cout)
        return jnp.einsum("nchw,co->nohw", z, w)

    def bn(z, gamma, beta, mean, var):
        g = (gamma / jnp.sqrt(var + eps)).reshape(1, Cout, 1, 1)
        b = (beta - mean * gamma / jnp.sqrt(var + eps)).reshape(1, Cout, 1, 1)
        return z * g + b

    pre = bn(conv1x1(x, params["w_main"]), params["bn_main_gamma"],
             params["bn_main_beta"], params["bn_main_mean"], params["bn_main_var"])
    spike = (jax.nn.sigmoid(params["plif_w"]) * pre >= 1.0).astype(jnp.float32)
    pre_a = bn(conv1x1(y, params["w_aac"]), params["bn_aac_gamma"],
               params["bn_aac_beta"], params["bn_aac_mean"], params["bn_aac_var"])
    return spike, jnp.maximum(pre_a, 0.0) + spike


if __name__ == "__main__":
    key = jax.random.PRNGKey(0)
    N, Cin, Cout, H, W = 2, 4, 8, 16, 16   # UpChannel: in_channels != out_channels

    ks = jax.random.split(key, 12)
    params = {
        # main conv1x1 (no bias) + BN (eval / running stats)
        "w_main": jax.random.normal(ks[0], (Cin, Cout), jnp.float32) * 0.5,
        "bn_main_gamma": 1.0 + 0.1 * jax.random.normal(ks[1], (Cout,), jnp.float32),
        "bn_main_beta": 0.1 * jax.random.normal(ks[2], (Cout,), jnp.float32),
        "bn_main_mean": 0.1 * jax.random.normal(ks[3], (Cout,), jnp.float32),
        "bn_main_var": jnp.abs(jax.random.normal(ks[4], (Cout,), jnp.float32)) + 0.5,
        # ParametricLIFNode: w init = -log(init_tau - 1) with init_tau=2.0 -> 0.0
        "plif_w": jnp.array(0.0, jnp.float32),
        # AAC branch: conv1x1 (no bias) + BN (eval) + ReLU
        "w_aac": jax.random.normal(ks[5], (Cin, Cout), jnp.float32) * 0.5,
        "bn_aac_gamma": 1.0 + 0.1 * jax.random.normal(ks[6], (Cout,), jnp.float32),
        "bn_aac_beta": 0.1 * jax.random.normal(ks[7], (Cout,), jnp.float32),
        "bn_aac_mean": 0.1 * jax.random.normal(ks[8], (Cout,), jnp.float32),
        "bn_aac_var": jnp.abs(jax.random.normal(ks[9], (Cout,), jnp.float32)) + 0.5,
    }

    x = jax.random.normal(ks[10], (N, Cin, H, W), jnp.float32)
    y = jax.random.normal(ks[11], (N, Cin, H, W), jnp.float32)

    out, y_out = jax.block_until_ready(dst_up_channel_block(x, y, params))

    out_ref, y_ref = _reference(x, y, params)
    # TODO(synk): ATan surrogate affects backward only; forward spike is a hard
    # threshold — scale folding reassociates FP ops, so values *exactly* at the
    # threshold could flip vs PyTorch (not exercised by these random inputs).
    assert jnp.allclose(out, out_ref, atol=1e-5), "spike output mismatch"
    assert jnp.allclose(y_out, y_ref, atol=1e-4), "aac+residual output mismatch"

    print("KERNEL_OK")
</pallas_src>

<mosaic_0001>
module attributes {stable_mosaic.version = 11 : i64} {
  func.func @_dst_up_kernel(%arg0: i32, %arg1: i32, %arg2: memref<1x4x256xf32, #tpu.memory_space<vmem>>, %arg3: memref<1x4x256xf32, #tpu.memory_space<vmem>>, %arg4: memref<8x4xf32, #tpu.memory_space<vmem>>, %arg5: memref<8x4xf32, #tpu.memory_space<vmem>>, %arg6: memref<8x2xf32, #tpu.memory_space<vmem>>, %arg7: memref<1x8x256xf32, #tpu.memory_space<vmem>>, %arg8: memref<1x8x256xf32, #tpu.memory_space<vmem>>) attributes {dimension_semantics = [#tpu.dimension_semantics<parallel>, #tpu.dimension_semantics<parallel>], iteration_bounds = array<i64: 2, 1>, scalar_prefetch = 0 : i64, scratch_operands = 0 : i64, tpu.core_type = #tpu.core_type<tc>, window_params = [{transform_indices = @transform_0, window_bounds = array<i64: 1, 4, 256>}, {transform_indices = @transform_1, window_bounds = array<i64: 1, 4, 256>}, {pipeline_mode = #tpu.pipeline_mode<synchronous>, transform_indices = @transform_2, window_bounds = array<i64: 8, 4>}, {pipeline_mode = #tpu.pipeline_mode<synchronous>, transform_indices = @transform_3, window_bounds = array<i64: 8, 4>}, {pipeline_mode = #tpu.pipeline_mode<synchronous>, transform_indices = @transform_4, window_bounds = array<i64: 8, 2>}, {transform_indices = @transform_5, window_bounds = array<i64: 1, 8, 256>}, {transform_indices = @transform_6, window_bounds = array<i64: 1, 8, 256>}]} {
    %c0 = arith.constant 0 : index
    %c0_0 = arith.constant 0 : index
    %0 = vector.load %arg6[%c0, %c0_0] : memref<8x2xf32, #tpu.memory_space<vmem>>, vector<8x2xf32>
    %1 = vector.extract_strided_slice %0 {offsets = [0, 0], sizes = [8, 1], strides = [1, 1]} : vector<8x2xf32> to vector<8x1xf32>
    %2 = vector.extract_strided_slice %0 {offsets = [0, 1], sizes = [8, 1], strides = [1, 1]} : vector<8x2xf32> to vector<8x1xf32>
    %c0_1 = arith.constant 0 : index
    %c0_2 = arith.constant 0 : index
    %3 = vector.load %arg4[%c0_1, %c0_2] : memref<8x4xf32, #tpu.memory_space<vmem>>, vector<8x4xf32>
    %c0_3 = arith.constant 0 : index
    %c0_4 = arith.constant 0 : index
    %4 = vector.load %arg5[%c0_3, %c0_4] : memref<8x4xf32, #tpu.memory_space<vmem>>, vector<8x4xf32>
    %c0_5 = arith.constant 0 : index
    %c0_6 = arith.constant 0 : index
    %c0_7 = arith.constant 0 : index
    %5 = vector.load %arg2[%c0_5, %c0_6, %c0_7] : memref<1x4x256xf32, #tpu.memory_space<vmem>>, vector<1x4x256xf32>
    %6 = vector.shape_cast %5 : vector<1x4x256xf32> to vector<4x256xf32>
    %cst = arith.constant dense<0.000000e+00> : vector<8x256xf32>
    %7 = tpu.matmul %3, %6, %cst {dimension_numbers = #tpu.dot_dimension_numbers<[1], [0], [0], [1], [0, 0, 1, 1], [], []>} : vector<8x4xf32>, vector<4x256xf32>, vector<8x256xf32> -> vector<8x256xf32>
    %8 = vector.broadcast %1 : vector<8x1xf32> to vector<8x256xf32>
    %9 = arith.addf %7, %8 : vector<8x256xf32>
    %cst_8 = arith.constant 1.000000e+00 : f32
    %10 = vector.broadcast %cst_8 : f32 to vector<8x256xf32>
    %11 = arith.cmpf oge, %9, %10 : vector<8x256xf32>
    %12 = arith.extui %11 : vector<8x256xi1> to vector<8x256xi32>
    %13 = arith.sitofp %12 : vector<8x256xi32> to vector<8x256xf32>
    %c0_9 = arith.constant 0 : index
    %c0_10 = arith.constant 0 : index
    %c0_11 = arith.constant 0 : index
    %14 = vector.load %arg7[%c0_9, %c0_10, %c0_11] : memref<1x8x256xf32, #tpu.memory_space<vmem>>, vector<1x8x256xf32>
    %15 = vector.shape_cast %14 : vector<1x8x256xf32> to vector<8x256xf32>
    %16 = vector.shape_cast %13 : vector<8x256xf32> to vector<1x8x256xf32>
    tpu.vector_store %arg7[%c0_9, %c0_10, %c0_11], %16 {strides = array<i32>} : memref<1x8x256xf32, #tpu.memory_space<vmem>>, vector<1x8x256xf32>,
    %c0_12 = arith.constant 0 : index
    %c0_13 = arith.constant 0 : index
    %c0_14 = arith.constant 0 : index
    %17 = vector.load %arg3[%c0_12, %c0_13, %c0_14] : memref<1x4x256xf32, #tpu.memory_space<vmem>>, vector<1x4x256xf32>
    %18 = vector.shape_cast %17 : vector<1x4x256xf32> to vector<4x256xf32>
    %cst_15 = arith.constant dense<0.000000e+00> : vector<8x256xf32>
    %19 = tpu.matmul %4, %18, %cst_15 {dimension_numbers = #tpu.dot_dimension_numbers<[1], [0], [0], [1], [0, 0, 1, 1], [], []>} : vector<8x4xf32>, vector<4x256xf32>, vector<8x256xf32> -> vector<8x256xf32>
    %20 = vector.broadcast %2 : vector<8x1xf32> to vector<8x256xf32>
    %21 = arith.addf %19, %20 : vector<8x256xf32>
    %cst_16 = arith.constant 0.000000e+00 : f32
    %22 = vector.broadcast %cst_16 : f32 to vector<8x256xf32>
    %23 = arith.maximumf %21, %22 : vector<8x256xf32>
    %24 = arith.addf %23, %13 : vector<8x256xf32>
    %c0_17 = arith.constant 0 : index
    %c0_18 = arith.constant 0 : index
    %c0_19 = arith.constant 0 : index
    %25 = vector.load %arg8[%c0_17, %c0_18, %c0_19] : memref<1x8x256xf32, #tpu.memory_space<vmem>>, vector<1x8x256xf32>
    %26 = vector.shape_cast %25 : vector<1x8x256xf32> to vector<8x256xf32>
    %27 = vector.shape_cast %24 : vector<8x256xf32> to vector<1x8x256xf32>
    tpu.vector_store %arg8[%c0_17, %c0_18, %c0_19], %27 {strides = array<i32>} : memref<1x8x256xf32, #tpu.memory_space<vmem>>, vector<1x8x256xf32>,
    return
  }
  func.func @transform_0(%arg0: i32, %arg1: i32) -> (i32, i32, i32) {
    %c0_i32 = arith.constant 0 : i32
    %c0_i32_0 = arith.constant 0 : i32
    return %arg0, %c0_i32, %arg1 : i32, i32, i32
  }
  func.func @transform_1(%arg0: i32, %arg1: i32) -> (i32, i32, i32) {
    %c0_i32 = arith.constant 0 : i32
    %c0_i32_0 = arith.constant 0 : i32
    return %arg0, %c0_i32, %arg1 : i32, i32, i32
  }
  func.func @transform_2(%arg0: i32, %arg1: i32) -> (i32, i32) {
    %c0_i32 = arith.constant 0 : i32
    %c0_i32_0 = arith.constant 0 : i32
    %c0_i32_1 = arith.constant 0 : i32
    return %c0_i32, %c0_i32_0 : i32, i32
  }
  func.func @transform_3(%arg0: i32, %arg1: i32) -> (i32, i32) {
    %c0_i32 = arith.constant 0 : i32
    %c0_i32_0 = arith.constant 0 : i32
    %c0_i32_1 = arith.constant 0 : i32
    return %c0_i32, %c0_i32_0 : i32, i32
  }
  func.func @transform_4(%arg0: i32, %arg1: i32) -> (i32, i32) {
    %c0_i32 = arith.constant 0 : i32
    %c0_i32_0 = arith.constant 0 : i32
    %c0_i32_1 = arith.constant 0 : i32
    return %c0_i32, %c0_i32_0 : i32, i32
  }
  func.func @transform_5(%arg0: i32, %arg1: i32) -> (i32, i32, i32) {
    %c0_i32 = arith.constant 0 : i32
    %c0_i32_0 = arith.constant 0 : i32
    return %arg0, %c0_i32, %arg1 : i32, i32, i32
  }
  func.func @transform_6(%arg0: i32, %arg1: i32) -> (i32, i32, i32) {
    %c0_i32 = arith.constant 0 : i32
    %c0_i32_0 = arith.constant 0 : i32
    return %arg0, %c0_i32, %arg1 : i32, i32, i32
  }
}

</mosaic_0001>

<llo_original>
// kernel: tpu_custom_call.1
$region0: #{tpu_custom_call.1}
  #allocation0 [shape = 'u32[]', space=smem, size = 0x4, offset = 0x4, fixed_abs, tag = 'smem constant byte address 0x4 - core index']
  #allocation1 [shape = 'u32[144,128]{1,0:T(1,128)}', space=vmem, size = 0x12000, scoped, tag = 'internal scratch']
  %s0 = inlined_call_operand.vmem [shape: f32[2,4,256], index: 0, kind: input, shape index: {}]
  %s1 = inlined_call_operand.vmem [shape: f32[2,4,256], index: 1, kind: input, shape index: {}]
  %s2 = inlined_call_operand.vmem [shape: f32[8,4], index: 2, kind: input, shape index: {}]
  %s3 = inlined_call_operand.vmem [shape: f32[8,4], index: 3, kind: input, shape index: {}]
  %s4 = inlined_call_operand.vmem [shape: f32[8,2], index: 4, kind: input, shape index: {}]
  %s5 = inlined_call_operand.hbm [shape: f32[2,8,256], index: 5, kind: output, shape index: {0}]
  %s6 = inlined_call_operand.hbm [shape: f32[2,8,256], index: 6, kind: output, shape index: {1}]
  %7 = xla_tuple %s5, %s6
  %s8 = sld [smem:[#allocation0]]
  $region61: #{tpu_custom_call.1} parent=0
    _
  %s10 = ssub.s32 1, %s8
  %s11 = scalar_select 0, %s10, %s8
  $region1: #{tpu_custom_call.1} parent=0
    #allocation2 [shape = 'u8[16384]{0}', space=vmem, size = 0x4000, scoped, tag = 'output window, operand 0']
    #allocation3 [shape = 's32[2]{0}', space=sflag, size = 0x8, scoped, tag = 'scoped memory for tpu_custom_call.1']
    #allocation4 [shape = 'u8[16384]{0}', space=vmem, size = 0x4000, scoped, tag = 'output window, operand 1']
    #allocation5 [shape = 's32[2]{0}', space=sflag, size = 0x8, scoped, tag = 'scoped memory for tpu_custom_call.1']
    %12 = vsyncpa [#allocation3], 0
    %s13 = scalar_lea.sflag [#allocation3], 1
    %14 = vsyncpa %s13, 0
    %15 = vsyncpa [#allocation5], 0
    %s16 = scalar_lea.sflag [#allocation5], 1
    %17 = vsyncpa %s16, 0
    loop: start=0, step=1, limit=4
    $region2: #{tpu_custom_call.1} parent=1 // loop_pre_header
      _
    $region3: #{tpu_custom_call.1} parent=1 // loop_header
      %s19 = sphi 0, %s23
      %p20 = scmp.ge.s32.totalorder %s19, 4
      %s26 = sphi 0, %s38
      %s27 = sphi 0, %s34
      %s28 = sphi 0, %s26
      %s29 = sphi 0, %s27
      %s30 = sphi 0, %s28
      %s31 = sphi 0, %s29
      %s43 = sphi 0, %s45
      %s46 = sphi 0, %s43
      %s47 = sphi 0, %s46
      %s63 = sphi 0, %s47
      %s71 = sphi 0, %s73
      %s74 = sphi 0, %s71
      %s75 = sphi 0, %s74
      %s91 = sphi 0, %s75
      %s95 = sphi 0, %s95
      %s97 = sphi 0, %s95
      %s98 = sphi 0, %s97
      %s112 = sphi 0, %s98
      %s116 = sphi 0, %s116
      %s118 = sphi 0, %s116
      %s119 = sphi 0, %s118
      %s133 = sphi 0, %s119
      %s137 = sphi 0, %s137
      %s139 = sphi 0, %s137
      %s140 = sphi 0, %s139
      %s154 = sphi 0, %s140
      %s162 = sphi 0, %s164
      %s165 = sphi 0, %s162
      %s166 = sphi 0, %s165
      %s182 = sphi 0, %s166
      %s190 = sphi 0, %s192
      %s193 = sphi 0, %s190
      %s194 = sphi 0, %s193
      %s210 = sphi 0, %s194
    $region4: #{tpu_custom_call.1} parent=1 // loop_header_branch
      %22 = sbr.rel (%p20) target = $region8
    $region5: #{tpu_custom_call.1} parent=1 // loop_body
      %s24 = ssub.s32 %s19, 1
      %s25 = ssub.s32 %s19, 2
      %s32 = sadd.s32 1, %s27
      %p33 = scmp.ge.s32.totalorder %s32, 1
      %s34 = scalar_select %p33, 0, %s32
      %s35 = sadd.s32 1, %s26
      %s36 = scalar_select %p33, %s35, %s26
      %p37 = scmp.ge.s32.totalorder %s36, 2
      %s38 = scalar_select %p37, 0, %s36
      %s39 = ssub.s32 %s26, %s38
      %s40 = ssub.s32 %s27, %s34
      %s41 = sor.u32 %s39, %s40
      %p42 = scmp.eq.s32.totalorder %s41, 0
      %s44 = sadd.s32 %s43, 1
      %s45 = scalar_select %p42, %s43, %s44
      %p48 = pneg %p42
      %p49 = scmp.eq.s32.totalorder %s19, 1
      %p50 = por %p48, %p49
      %p51 = scmp.ne.s32.totalorder %s43, %s46
      %p52 = scmp.eq.s32.totalorder %s19, 0
      %p53 = por %p51, %p52
      %p54 = scmp.ne.s32.totalorder %s43, %s46
      %p55 = scmp.eq.s32.totalorder %s24, 1
      %p56 = por %p54, %p55
      %p57 = scmp.ne.s32.totalorder %s46, %s47
      %p58 = scmp.eq.s32.totalorder %s24, 0
      %p59 = por %p57, %p58
      %p60 = scmp.ne.s32.totalorder %s46, %s47
      %p61 = scmp.eq.s32.totalorder %s25, 1
      %p62 = por %p60, %p61
      %p64 = scmp.ne.s32.totalorder %s47, %s63
      %p65 = scmp.eq.s32.totalorder %s25, 0
      %p66 = por %p64, %p65
      %s67 = ssub.s32 %s26, %s38
      %s68 = ssub.s32 %s27, %s34
      %s69 = sor.u32 %s67, %s68
      %p70 = scmp.eq.s32.totalorder %s69, 0
      %s72 = sadd.s32 %s71, 1
      %s73 = scalar_select %p70, %s71, %s72
      %p76 = pneg %p70
      %p77 = scmp.eq.s32.totalorder %s19, 1
      %p78 = por %p76, %p77
      %p79 = scmp.ne.s32.totalorder %s71, %s74
      %p80 = scmp.eq.s32.totalorder %s19, 0
      %p81 = por %p79, %p80
      %p82 = scmp.ne.s32.totalorder %s71, %s74
      %p83 = scmp.eq.s32.totalorder %s24, 1
      %p84 = por %p82, %p83
      %p85 = scmp.ne.s32.totalorder %s74, %s75
      %p86 = scmp.eq.s32.totalorder %s24, 0
      %p87 = por %p85, %p86
      %p88 = scmp.ne.s32.totalorder %s74, %s75
      %p89 = scmp.eq.s32.totalorder %s25, 1
      %p90 = por %p88, %p89
      %p92 = scmp.ne.s32.totalorder %s75, %s91
      %p93 = scmp.eq.s32.totalorder %s25, 0
      %p94 = por %p92, %p93
      %s96 = sadd.s32 %s95, 1
      %p99 = scmp.eq.s32.totalorder %s19, 1
      %p100 = scmp.ne.s32.totalorder %s95, %s97
      %p101 = scmp.eq.s32.totalorder %s19, 0
      %p102 = por %p100, %p101
      %p103 = scmp.ne.s32.totalorder %s95, %s97
      %p104 = scmp.eq.s32.totalorder %s24, 1
      %p105 = por %p103, %p104
      %p106 = scmp.ne.s32.totalorder %s97, %s98
      %p107 = scmp.eq.s32.totalorder %s24, 0
      %p108 = por %p106, %p107
      %p109 = scmp.ne.s32.totalorder %s97, %s98
      %p110 = scmp.eq.s32.totalorder %s25, 1
      %p111 = por %p109, %p110
      %p113 = scmp.ne.s32.totalorder %s98, %s112
      %p114 = scmp.eq.s32.totalorder %s25, 0
      %p115 = por %p113, %p114
      %s117 = sadd.s32 %s116, 1
      %p120 = scmp.eq.s32.totalorder %s19, 1
      %p121 = scmp.ne.s32.totalorder %s116, %s118
      %p122 = scmp.eq.s32.totalorder %s19, 0
      %p123 = por %p121, %p122
      %p124 = scmp.ne.s32.totalorder %s116, %s118
      %p125 = scmp.eq.s32.totalorder %s24, 1
      %p126 = por %p124, %p125
      %p127 = scmp.ne.s32.totalorder %s118, %s119
      %p128 = scmp.eq.s32.totalorder %s24, 0
      %p129 = por %p127, %p128
      %p130 = scmp.ne.s32.totalorder %s118, %s119
      %p131 = scmp.eq.s32.totalorder %s25, 1
      %p132 = por %p130, %p131
      %p134 = scmp.ne.s32.totalorder %s119, %s133
      %p135 = scmp.eq.s32.totalorder %s25, 0
      %p136 = por %p134, %p135
      %s138 = sadd.s32 %s137, 1
      %p141 = scmp.eq.s32.totalorder %s19, 1
      %p142 = scmp.ne.s32.totalorder %s137, %s139
      %p143 = scmp.eq.s32.totalorder %s19, 0
      %p144 = por %p142, %p143
      %p145 = scmp.ne.s32.totalorder %s137, %s139
      %p146 = scmp.eq.s32.totalorder %s24, 1
      %p147 = por %p145, %p146
      %p148 = scmp.ne.s32.totalorder %s139, %s140
      %p149 = scmp.eq.s32.totalorder %s24, 0
      %p150 = por %p148, %p149
      %p151 = scmp.ne.s32.totalorder %s139, %s140
      %p152 = scmp.eq.s32.totalorder %s25, 1
      %p153 = por %p151, %p152
      %p155 = scmp.ne.s32.totalorder %s140, %s154
      %p156 = scmp.eq.s32.totalorder %s25, 0
      %p157 = por %p155, %p156
      %s158 = ssub.s32 %s26, %s38
      %s159 = ssub.s32 %s27, %s34
      %s160 = sor.u32 %s158, %s159
      %p161 = scmp.eq.s32.totalorder %s160, 0
      %s163 = sadd.s32 %s162, 1
      %s164 = scalar_select %p161, %s162, %s163
      %p167 = pneg %p161
      %p168 = scmp.eq.s32.totalorder %s19, 1
      %p169 = por %p167, %p168
      %p170 = scmp.ne.s32.totalorder %s162, %s165
      %p171 = scmp.eq.s32.totalorder %s19, 0
      %p172 = por %p170, %p171
      %p173 = scmp.ne.s32.totalorder %s162, %s165
      %p174 = scmp.eq.s32.totalorder %s24, 1
      %p175 = por %p173, %p174
      %p176 = scmp.ne.s32.totalorder %s165, %s166
      %p177 = scmp.eq.s32.totalorder %s24, 0
      %p178 = por %p176, %p177
      %p179 = scmp.ne.s32.totalorder %s165, %s166
      %p180 = scmp.eq.s32.totalorder %s25, 1
      %p181 = por %p179, %p180
      %p183 = scmp.ne.s32.totalorder %s166, %s182
      %p184 = scmp.eq.s32.totalorder %s25, 0
      %p185 = por %p183, %p184
      %s186 = ssub.s32 %s26, %s38
      %s187 = ssub.s32 %s27, %s34
      %s188 = sor.u32 %s186, %s187
      %p189 = scmp.eq.s32.totalorder %s188, 0
      %s191 = sadd.s32 %s190, 1
      %s192 = scalar_select %p189, %s190, %s191
      %p195 = pneg %p189
      %p196 = scmp.eq.s32.totalorder %s19, 1
      %p197 = por %p195, %p196
      %p198 = scmp.ne.s32.totalorder %s190, %s193
      %p199 = scmp.eq.s32.totalorder %s19, 0
      %p200 = por %p198, %p199
      %p201 = scmp.ne.s32.totalorder %s190, %s193
      %p202 = scmp.eq.s32.totalorder %s24, 1
      %p203 = por %p201, %p202
      %p204 = scmp.ne.s32.totalorder %s193, %s194
      %p205 = scmp.eq.s32.totalorder %s24, 0
      %p206 = por %p204, %p205
      %p207 = scmp.ne.s32.totalorder %s193, %s194
      %p208 = scmp.eq.s32.totalorder %s25, 1
      %p209 = por %p207, %p208
      %p211 = scmp.ne.s32.totalorder %s194, %s210
      %p212 = scmp.eq.s32.totalorder %s25, 0
      %p213 = por %p211, %p212
      %p214 = scmp.le.s32.totalorder 1, %s19
      %p215 = scmp.lt.s32.totalorder %s19, 3
      %p216 = pnand %p214, %p215
      %p217 = pneg %p216
      // Predicated region
      $region9: #{tpu_custom_call.1} parent=5 // pred_check
        _
      $region10: #{tpu_custom_call.1} parent=5 // pred_check_branch
        %219 = sbr.rel (%p216) target = $region12
      $region11: #{tpu_custom_call.1} parent=5 // pred_region
        %s220 = ssub.s32 %s19, 1
        // Predicated region
        $region13: #{tpu_custom_call.1} parent=11 // pred_check
          %p221 = pneg %p108
        $region14: #{tpu_custom_call.1} parent=11 // pred_check_branch
          %223 = sbr.rel (%p221) target = $region16
        $region15: #{tpu_custom_call.1} parent=11 // pred_region
          _
        $region16: #{tpu_custom_call.1} parent=11 // pred_fallthru
          _
        // Predicated region
        $region17: #{tpu_custom_call.1} parent=11 // pred_check
          %p224 = pneg %p129
        $region18: #{tpu_custom_call.1} parent=11 // pred_check_branch
          %226 = sbr.rel (%p224) target = $region20
        $region19: #{tpu_custom_call.1} parent=11 // pred_region
          _
        $region20: #{tpu_custom_call.1} parent=11 // pred_fallthru
          _
        // Predicated region
        $region21: #{tpu_custom_call.1} parent=11 // pred_check
          %p227 = pneg %p150
        $region22: #{tpu_custom_call.1} parent=11 // pred_check_branch
          %229 = sbr.rel (%p227) target = $region24
        $region23: #{tpu_custom_call.1} parent=11 // pred_region
          _
        $region24: #{tpu_custom_call.1} parent=11 // pred_fallthru
          _
      $region12: #{tpu_custom_call.1} parent=5 // pred_fallthru
        _
      %p230 = scmp.lt.s32.totalorder %s19, 2
      // Predicated region
      $region25: #{tpu_custom_call.1} parent=5 // pred_check
        %p231 = pneg %p230
      $region26: #{tpu_custom_call.1} parent=5 // pred_check_branch
        %233 = sbr.rel (%p231) target = $region28
      $region27: #{tpu_custom_call.1} parent=5 // pred_region
        // Predicated region
        $region29: #{tpu_custom_call.1} parent=27 // pred_check
          %p234 = pneg %p53
        $region30: #{tpu_custom_call.1} parent=27 // pred_check_branch
          %236 = sbr.rel (%p234) target = $region32
        $region31: #{tpu_custom_call.1} parent=27 // pred_region
          %s237 = smul.u32 2, %s27
          %p238 = scmp.lt.s32.totalorder %s26, 1
          %s239 = scalar_select %p238, %s26, 1
          %p240 = scmp.lt.s32.totalorder %s237, 1
          %s241 = scalar_select %p240, %s237, 1
          %s242 = smul.addr %s239, 2
          %s243 = sadd.s32 %s241, %s242
          %s244 = smul.addr %s243, 4
          %s245 = scalar_lea.vmem %s0, %s244
          %s246 = smul.u32 2, %s27
        $region32: #{tpu_custom_call.1} parent=27 // pred_fallthru
          _
        // Predicated region
        $region33: #{tpu_custom_call.1} parent=27 // pred_check
          %p247 = pneg %p81
        $region34: #{tpu_custom_call.1} parent=27 // pred_check_branch
          %249 = sbr.rel (%p247) target = $region36
        $region35: #{tpu_custom_call.1} parent=27 // pred_region
          %s250 = smul.u32 2, %s27
          %p251 = scmp.lt.s32.totalorder %s26, 1
          %s252 = scalar_select %p251, %s26, 1
          %p253 = scmp.lt.s32.totalorder %s250, 1
          %s254 = scalar_select %p253, %s250, 1
          %s255 = smul.addr %s252, 2
          %s256 = sadd.s32 %s254, %s255
          %s257 = smul.addr %s256, 4
          %s258 = scalar_lea.vmem %s1, %s257
          %s259 = smul.u32 2, %s27
        $region36: #{tpu_custom_call.1} parent=27 // pred_fallthru
          _
      $region28: #{tpu_custom_call.1} parent=5 // pred_fallthru
        _
      %p260 = scmp.le.s32.totalorder 1, %s19
      %p261 = scmp.lt.s32.totalorder %s19, 3
      %p262 = pnand %p260, %p261
      %p263 = pneg %p262
      // Predicated region
      $region37: #{tpu_custom_call.1} parent=5 // pred_check
        _
      $region38: #{tpu_custom_call.1} parent=5 // pred_check_branch
        %265 = sbr.rel (%p262) target = $region40
      $region39: #{tpu_custom_call.1} parent=5 // pred_region
        %s266 = ssub.s32 %s19, 1
        %s267 = smul.u32 2, %s29
        %p268 = scmp.lt.s32.totalorder %s28, 1
        %s269 = scalar_select %p268, %s28, 1
        %p270 = scmp.lt.s32.totalorder %s267, 1
        %s271 = scalar_select %p270, %s267, 1
        %s272 = smul.addr %s269, 2
        %s273 = sadd.s32 %s271, %s272
        %s274 = smul.addr %s273, 4
        %s275 = scalar_lea.vmem %s0, %s274
        %p276 = pneg %p59
        %p277 = pneg %p56
        %s278 = smul.u32 2, %s29
        %p279 = scmp.lt.s32.totalorder %s28, 1
        %s280 = scalar_select %p279, %s28, 1
        %p281 = scmp.lt.s32.totalorder %s278, 1
        %s282 = scalar_select %p281, %s278, 1
        %s283 = smul.addr %s280, 2
        %s284 = sadd.s32 %s282, %s283
        %s285 = smul.addr %s284, 4
        %s286 = scalar_lea.vmem %s1, %s285
        %p287 = pneg %p87
        %p288 = pneg %p84
        %p289 = pneg %p108
        %p290 = pneg %p105
        %p291 = pneg %p129
        %p292 = pneg %p126
        %p293 = pneg %p150
        %p294 = pneg %p147
        %p295 = pneg %p178
        %p296 = pneg %p175
        %s297 = sand.u32 %s165, 1
        %s298 = scalar_lea.sflag [#allocation3], %s297
        %s299 = sand.u32 %s165, 1
        %s300 = smul.addr %s299, 16
        %s301 = scalar_lea.vmem [#allocation2], %s300
        %p302 = pneg %p206
        %p303 = pneg %p203
        %s304 = sand.u32 %s193, 1
        %s305 = scalar_lea.sflag [#allocation5], %s304
        %s306 = sand.u32 %s193, 1
        %s307 = smul.addr %s306, 16
        %s308 = scalar_lea.vmem [#allocation4], %s307
        %s309 = smul.u32 2, %s29
        %p310 = scmp.lt.s32.totalorder %s28, 1
        %s311 = scalar_select %p310, %s28, 1
        %p312 = scmp.lt.s32.totalorder %s309, 1
        %s313 = scalar_select %p312, %s309, 1
        %s314 = smul.addr %s311, 2
        %s315 = sadd.s32 %s313, %s314
        %s316 = smul.addr %s315, 4
        %s317 = scalar_lea.vmem %s0, %s316
        %s318 = smul.u32 2, %s29
        %s319 = smul.u32 2, %s29
        %p320 = scmp.lt.s32.totalorder %s28, 1
        %s321 = scalar_select %p320, %s28, 1
        %p322 = scmp.lt.s32.totalorder %s319, 1
        %s323 = scalar_select %p322, %s319, 1
        %s324 = smul.addr %s321, 2
        %s325 = sadd.s32 %s323, %s324
        %s326 = smul.addr %s325, 4
        %s327 = scalar_lea.vmem %s1, %s326
        %s328 = smul.u32 2, %s29
        %s329 = smul.u32 2, %s29
        %s330 = smul.u32 2, %s29
        %v331 = vld [vmem:[%s4] sm:$0xff]
        %v332 = vld [vmem:[%s2] sm:$0xff]
        %v333 = vld [vmem:[%s3] sm:$0xff]
        %v334 = vld [vmem:[%s317] sm:$0xff]
        %336 = vset.pattern.permute.xlu0 0
        %337 = vperm.xlu0 %336, %v331
        %v338 = vpop.permute.xlu0 %337
        %v341 = vcombine.high %v334, %v334
        %vm342 = vcmask 31744
        %v344 = vsel %vm342, %v332, 0
        %vm346 = vcmask 1043456
        %v347 = vsel %vm346, %v334, 0
        %v349 = vsel %vm346, %v341, 0
        %351 = vmatprep.subr.mxu0 %v349
        %352 = vmatpush1.msra.mxu0 %v347
        %353 = vmatprep.subr.mxu0 0.0
        %354 = vmatpush1.msra.mxu0 0.0
        %355 = vmatprep.subr.mxu0 0.0
        %356 = vmatpush1.msra.mxu0 0.0
        %357 = vmatprep.subr.mxu0 0.0
        %358 = vmatpush1.msra.mxu0 0.0
        %359 = vmatprep.subr.mxu0 0.0
        %360 = vmatpush1.msra.mxu0 0.0
        %361 = vmatprep.subr.mxu0 0.0
        %362 = vmatpush1.msra.mxu0 0.0
        %363 = vmatprep.subr.mxu0 0.0
        %364 = vmatpush1.msra.mxu0 0.0
        %365 = vmatprep.subr.mxu0 0.0
        %366 = vmatpush1.msra.mxu0 0.0
        %367 = vmatprep.subr.mxu0 0.0
        %368 = vmatpush1.msra.mxu0 0.0
        %369 = vmatprep.subr.mxu0 0.0
        %370 = vmatpush1.msra.mxu0 0.0
        %371 = vmatprep.subr.mxu0 0.0
        %372 = vmatpush1.msra.mxu0 0.0
        %373 = vmatprep.subr.mxu0 0.0
        %374 = vmatpush1.msra.mxu0 0.0
        %375 = vmatprep.subr.mxu0 0.0
        %376 = vmatpush1.msra.mxu0 0.0
        %377 = vmatprep.subr.mxu0 0.0
        %378 = vmatpush1.msra.mxu0 0.0
        %379 = vmatprep.subr.mxu0 0.0
        %380 = vmatpush1.msra.mxu0 0.0
        %381 = vmatprep.subr.mxu0 0.0
        %382 = vmatpush1.msra.mxu0 0.0
        %383 = vmatprep.subr.mxu0 0.0
        %384 = vmatpush1.msra.mxu0 0.0
        %385 = vmatprep.subr.mxu0 0.0
        %386 = vmatpush1.msra.mxu0 0.0
        %387 = vmatprep.subr.mxu0 0.0
        %388 = vmatpush1.msra.mxu0 0.0
        %389 = vmatprep.subr.mxu0 0.0
        %390 = vmatpush1.msra.mxu0 0.0
        %391 = vmatprep.subr.mxu0 0.0
        %392 = vmatpush1.msra.mxu0 0.0
        %393 = vmatprep.subr.mxu0 0.0
        %394 = vmatpush1.msra.mxu0 0.0
        %395 = vmatprep.subr.mxu0 0.0
        %396 = vmatpush1.msra.mxu0 0.0
        %397 = vmatprep.subr.mxu0 0.0
        %398 = vmatpush1.msra.mxu0 0.0
        %399 = vmatprep.subr.mxu0 0.0
        %400 = vmatpush1.msra.mxu0 0.0
        %401 = vmatprep.subr.mxu0 0.0
        %402 = vmatpush1.msra.mxu0 0.0
        %403 = vmatprep.subr.mxu0 0.0
        %404 = vmatpush1.msra.mxu0 0.0
        %405 = vmatprep.subr.mxu0 0.0
        %406 = vmatpush1.msra.mxu0 0.0
        %407 = vmatprep.subr.mxu0 0.0
        %408 = vmatpush1.msra.mxu0 0.0
        %409 = vmatprep.subr.mxu0 0.0
        %410 = vmatpush1.msra.mxu0 0.0
        %411 = vmatprep.subr.mxu0 0.0
        %412 = vmatpush1.msra.mxu0 0.0
        %413 = vmatprep.subr.mxu0 0.0
        %414 = vmatpush1.msra.mxu0 0.0
        %415 = vmatprep.mubr.f32.mxu0 0.0
        %416 = vmatmul.mubr.f32.gmra.mrb[0].mxu0 %v344
        %v417 = vpop.f32.mrb[0].mxu0
        %v418 = vadd.f32 %v338, %v417
        %v419 = vpop.f32.mrb[0].mxu0
        %v420 = vadd.f32 %v338, %v419
        %421 = vdwg.mxu0
        %vm422 = vcmp.ge.f32.partialorder %v418, 1.0
        %vm423 = vcmp.ge.f32.partialorder %v420, 1.0
        %v424 = vsel %vm422, 1, 0
        %v425 = vsel %vm423, 1, 0
        %v426 = vcvt.s32.f32 %v424
        %v427 = vcvt.s32.f32 %v425
        %428 = vst [vmem:[%s301] sm:$0xff] %v426
        %429 = vst [vmem:[%s301 + $0x8] sm:$0xff] %v427
        %v430 = vld [vmem:[%s327] sm:$0xff]
        %431 = vset.pattern.permute.xlu0 1
        %432 = vperm.xlu0 %431, %v331
        %v433 = vpop.permute.xlu0 %432
        %v436 = vcombine.high %v430, %v430
        %v438 = vsel %vm342, %v333, 0
        %v440 = vsel %vm346, %v430, 0
        %v442 = vsel %vm346, %v436, 0
        %444 = vmatprep.subr.mxu0 %v442
        %445 = vmatpush1.msra.mxu0 %v440
        %446 = vmatprep.subr.mxu0 0.0
        %447 = vmatpush1.msra.mxu0 0.0
        %448 = vmatprep.subr.mxu0 0.0
        %449 = vmatpush1.msra.mxu0 0.0
        %450 = vmatprep.subr.mxu0 0.0
        %451 = vmatpush1.msra.mxu0 0.0
        %452 = vmatprep.subr.mxu0 0.0
        %453 = vmatpush1.msra.mxu0 0.0
        %454 = vmatprep.subr.mxu0 0.0
        %455 = vmatpush1.msra.mxu0 0.0
        %456 = vmatprep.subr.mxu0 0.0
        %457 = vmatpush1.msra.mxu0 0.0
        %458 = vmatprep.subr.mxu0 0.0
        %459 = vmatpush1.msra.mxu0 0.0
        %460 = vmatprep.subr.mxu0 0.0
        %461 = vmatpush1.msra.mxu0 0.0
        %462 = vmatprep.subr.mxu0 0.0
        %463 = vmatpush1.msra.mxu0 0.0
        %464 = vmatprep.subr.mxu0 0.0
        %465 = vmatpush1.msra.mxu0 0.0
        %466 = vmatprep.subr.mxu0 0.0
        %467 = vmatpush1.msra.mxu0 0.0
        %468 = vmatprep.subr.mxu0 0.0
        %469 = vmatpush1.msra.mxu0 0.0
        %470 = vmatprep.subr.mxu0 0.0
        %471 = vmatpush1.msra.mxu0 0.0
        %472 = vmatprep.subr.mxu0 0.0
        %473 = vmatpush1.msra.mxu0 0.0
        %474 = vmatprep.subr.mxu0 0.0
        %475 = vmatpush1.msra.mxu0 0.0
        %476 = vmatprep.subr.mxu0 0.0
        %477 = vmatpush1.msra.mxu0 0.0
        %478 = vmatprep.subr.mxu0 0.0
        %479 = vmatpush1.msra.mxu0 0.0
        %480 = vmatprep.subr.mxu0 0.0
        %481 = vmatpush1.msra.mxu0 0.0
        %482 = vmatprep.subr.mxu0 0.0
        %483 = vmatpush1.msra.mxu0 0.0
        %484 = vmatprep.subr.mxu0 0.0
        %485 = vmatpush1.msra.mxu0 0.0
        %486 = vmatprep.subr.mxu0 0.0
        %487 = vmatpush1.msra.mxu0 0.0
        %488 = vmatprep.subr.mxu0 0.0
        %489 = vmatpush1.msra.mxu0 0.0
        %490 = vmatprep.subr.mxu0 0.0
        %491 = vmatpush1.msra.mxu0 0.0
        %492 = vmatprep.subr.mxu0 0.0
        %493 = vmatpush1.msra.mxu0 0.0
        %494 = vmatprep.subr.mxu0 0.0
        %495 = vmatpush1.msra.mxu0 0.0
        %496 = vmatprep.subr.mxu0 0.0
        %497 = vmatpush1.msra.mxu0 0.0
        %498 = vmatprep.subr.mxu0 0.0
        %499 = vmatpush1.msra.mxu0 0.0
        %500 = vmatprep.subr.mxu0 0.0
        %501 = vmatpush1.msra.mxu0 0.0
        %502 = vmatprep.subr.mxu0 0.0
        %503 = vmatpush1.msra.mxu0 0.0
        %504 = vmatprep.subr.mxu0 0.0
        %505 = vmatpush1.msra.mxu0 0.0
        %506 = vmatprep.subr.mxu0 0.0
        %507 = vmatpush1.msra.mxu0 0.0
        %508 = vmatprep.mubr.f32.mxu0 0.0
        %509 = vmatmul.mubr.f32.gmra.mrb[0].mxu0 %v438
        %v510 = vpop.f32.mrb[0].mxu0
        %v511 = vadd.f32 %v433, %v510
        %v512 = vpop.f32.mrb[0].mxu0
        %v513 = vadd.f32 %v433, %v512
        %514 = vdwg.mxu0
        %v515 = vmax.f32 %v511, 0.0
        %v516 = vmax.f32 %v513, 0.0
        %v517 = vadd.f32 %v515, %v426
        %v518 = vadd.f32 %v516, %v427
        %519 = vst [vmem:[%s308] sm:$0xff] %v517
        %520 = vst [vmem:[%s308 + $0x8] sm:$0xff] %v518
        %s521 = sand.u32 %s165, 1
        %s522 = scalar_lea.sflag [#allocation3], %s521
        %s523 = sand.u32 %s165, 1
        %s524 = smul.addr %s523, 16
        %s525 = scalar_lea.vmem [#allocation2], %s524
        %s526 = sand.u32 %s193, 1
        %s527 = scalar_lea.sflag [#allocation5], %s526
        %s528 = sand.u32 %s193, 1
        %s529 = smul.addr %s528, 16
        %s530 = scalar_lea.vmem [#allocation4], %s529
        // Predicated region
        $region41: #{tpu_custom_call.1} parent=39 // pred_check
          %p531 = pneg %p175
        $region42: #{tpu_custom_call.1} parent=39 // pred_check_branch
          %533 = sbr.rel (%p531) target = $region44
        $region43: #{tpu_custom_call.1} parent=39 // pred_region
          %s534 = smul.u32 2, %s29
          %s536 = ssub.s32 256, 256
          %537 = vsyncadd %s522, %s536
          %s538 = smul.addr %s28, 2
          %s539 = sadd.s32 %s534, %s538
          %s540 = smul.addr %s539, 128
          %s541 = scalar_lea.hbm %s5, %s540
          %s543 = sshll.u32 %s525, 4
          %s544 = int_to_ptr.vmem [resolvable:$true] %s543
          %546 = dma.vmem_to_hbm [thread:$0]  %s544, 256, %s541, %s522
        $region44: #{tpu_custom_call.1} parent=39 // pred_fallthru
          _
        // Predicated region
        $region45: #{tpu_custom_call.1} parent=39 // pred_check
          %p547 = pneg %p203
        $region46: #{tpu_custom_call.1} parent=39 // pred_check_branch
          %549 = sbr.rel (%p547) target = $region48
        $region47: #{tpu_custom_call.1} parent=39 // pred_region
          %s550 = smul.u32 2, %s29
          %s552 = ssub.s32 256, 256
          %553 = vsyncadd %s527, %s552
          %s554 = smul.addr %s28, 2
          %s555 = sadd.s32 %s550, %s554
          %s556 = smul.addr %s555, 128
          %s557 = scalar_lea.hbm %s6, %s556
          %s559 = sshll.u32 %s530, 4
          %s560 = int_to_ptr.vmem [resolvable:$true] %s559
          %562 = dma.vmem_to_hbm [thread:$0]  %s560, 256, %s557, %s527
        $region48: #{tpu_custom_call.1} parent=39 // pred_fallthru
          _
      $region40: #{tpu_custom_call.1} parent=5 // pred_fallthru
        _
      %p563 = scmp.le.s32.totalorder 2, %s19
      // Predicated region
      $region49: #{tpu_custom_call.1} parent=5 // pred_check
        %p564 = pneg %p563
      $region50: #{tpu_custom_call.1} parent=5 // pred_check_branch
        %566 = sbr.rel (%p564) target = $region52
      $region51: #{tpu_custom_call.1} parent=5 // pred_region
        %s567 = ssub.s32 %s19, 2
        // Predicated region
        $region53: #{tpu_custom_call.1} parent=51 // pred_check
          %p568 = pneg %p181
        $region54: #{tpu_custom_call.1} parent=51 // pred_check_branch
          %570 = sbr.rel (%p568) target = $region56
        $region55: #{tpu_custom_call.1} parent=51 // pred_region
          %s571 = sand.u32 %s166, 1
          %s572 = scalar_lea.sflag [#allocation3], %s571
          %s573 = sand.u32 %s166, 1
          %s574 = smul.addr %s573, 16
          %s575 = scalar_lea.vmem [#allocation2], %s574
          %576 = dma.done %s572, 256
        $region56: #{tpu_custom_call.1} parent=51 // pred_fallthru
          _
        // Predicated region
        $region57: #{tpu_custom_call.1} parent=51 // pred_check
          %p577 = pneg %p209
        $region58: #{tpu_custom_call.1} parent=51 // pred_check_branch
          %579 = sbr.rel (%p577) target = $region60
        $region59: #{tpu_custom_call.1} parent=51 // pred_region
          %s580 = sand.u32 %s194, 1
          %s581 = scalar_lea.sflag [#allocation5], %s580
          %s582 = sand.u32 %s194, 1
          %s583 = smul.addr %s582, 16
          %s584 = scalar_lea.vmem [#allocation4], %s583
          %585 = dma.done %s581, 256
        $region60: #{tpu_custom_call.1} parent=51 // pred_fallthru
          _
      $region52: #{tpu_custom_call.1} parent=5 // pred_fallthru
        _
    $region6: #{tpu_custom_call.1} parent=1 // loop_footer
      %s23 = sadd.s32 1, %s19
    $region7: #{tpu_custom_call.1} parent=1 // loop_footer_branch
      %18 = sbr.rel target = $region3
    $region8: #{tpu_custom_call.1} parent=1 // loop_exit
      _
    %586 = vsyncpa [#allocation3], 1
    %s587 = scalar_lea.sflag [#allocation3], 1
    %588 = vsyncpa %s587, 1
    %589 = vsyncpa [#allocation5], 1
    %s590 = scalar_lea.sflag [#allocation5], 1
    %591 = vsyncpa %s590, 1

</llo_original>
